<compile_context>
chip_gen: v7x
topology: tpu7x:2x2x1
jax: 0.10.0
libtpu: 0.0.40
codegen_flags: <defaults>
</compile_context>

<pallas_src>
import functools

import jax
import jax.numpy as jnp
from jax import lax
from jax.experimental import pallas as pl
from jax.experimental.pallas import tpu as pltpu


def _gp_kernel(g_ref, pen_ref, acc_ref, *, s_valid, s_tile, needs_mask):
    """Per-row sum of squares over feature tiles; per-row penalty at the end.

    g_ref:   (1, S_TILE, 128) tile of the flattened gradient (native dtype)
    pen_ref: (1, 1, 128) per-row penalty, broadcast across lanes
    acc_ref: (1, 128) f32 lane-wide running sum of squares for the current row
    """
    j = pl.program_id(1)

    @pl.when(j == 0)
    def _():
        acc_ref[...] = jnp.zeros_like(acc_ref)

    g = g_ref[0].astype(jnp.float32)            # (S_TILE, 128), f32 accumulation
    gg = g * g
    if needs_mask:
        # Ragged last feature tile: zero sublane-rows past the valid extent.
        row = j * s_tile + lax.broadcasted_iota(jnp.int32, (s_tile, 128), 0)
        gg = jnp.where(row < s_valid, gg, 0.0)
    # Sublane reduce only per step; cross-lane reduce deferred to finalize.
    acc_ref[...] += jnp.sum(gg, axis=0, keepdims=True)

    @pl.when(j == pl.num_programs(1) - 1)
    def _():
        sumsq = jnp.sum(acc_ref[...])           # single cross-lane reduce / row
        pen = (jnp.sqrt(sumsq) - 1.0) ** 2
        pen_ref[...] = jnp.full((1, 1, 128), pen, dtype=jnp.float32)


@functools.partial(jax.jit, static_argnames=("max_block_bytes",))
def gradient_penalty_from_grad(grad_interp, max_block_bytes=2 * 1024 * 1024):
    """Pallas hot path: loss = mean((||grad_interp.reshape(B,-1)||_2 - 1)^2)."""
    B = grad_interp.shape[0]
    g2d = grad_interp.reshape(B, -1)            # native dtype, no astype pass
    N = g2d.shape[1]

    # View the feature axis as (S, 128) lanes. Pad only if N is not a multiple
    # of 128 (zeros do not change the sum of squares).
    pad = (-N) % 128
    if pad:
        # TODO(synk): uncommon path; jnp.pad adds one extra HBM pass. Could be
        # removed with an in-kernel lane mask on a 2D layout.
        g2d = jnp.pad(g2d, ((0, 0), (0, pad)))
    Np = N + pad
    S = Np // 128
    g3d = g2d.reshape(B, S, 128)

    # Explicit VMEM budget: block bytes <= max_block_bytes, double-buffered,
    # so it fits the default scoped VMEM on v5e/v6e/v7x without raising limits.
    itemsize = jnp.dtype(g3d.dtype).itemsize
    max_s_tile = max(8, (max_block_bytes // (128 * itemsize)) // 8 * 8)
    if S <= max_s_tile:
        s_tile = S                               # full-dim block, always legal
    else:
        s_tile = max_s_tile                      # multiple of 8 (ragged tail OK)
    n_tiles = pl.cdiv(S, s_tile)
    needs_mask = (S % s_tile) != 0

    kernel = functools.partial(
        _gp_kernel, s_valid=S, s_tile=s_tile, needs_mask=needs_mask)

    pen = pl.pallas_call(
        kernel,
        out_shape=jax.ShapeDtypeStruct((B, 1, 128), jnp.float32),
        grid_spec=pltpu.PrefetchScalarGridSpec(
            num_scalar_prefetch=0,
            grid=(B, n_tiles),
            in_specs=[pl.BlockSpec((1, s_tile, 128), lambda b, j: (b, j, 0))],
            out_specs=pl.BlockSpec((1, 1, 128), lambda b, j: (b, 0, 0)),
            scratch_shapes=[pltpu.VMEM((1, 128), jnp.float32)],
        ),
        compiler_params=pltpu.CompilerParams(
            dimension_semantics=("parallel", "arbitrary"),
        ),
        cost_estimate=pl.CostEstimate(
            flops=2 * B * Np,
            transcendentals=B,
            bytes_accessed=B * Np * itemsize + B * 128 * 4,
        ),
    )(g3d)

    # Tiny B-element mean kept outside the kernel so the batch grid axis can
    # stay "parallel" (megacore on v7x) without a shared scalar output block.
    return jnp.mean(pen[:, 0, 0])


def gradient_penalty_loss(discriminator_fn, interpolates):
    """Full forward: mirrors GradientPenaltyLoss.forward.

    torch.autograd.grad(outputs=interpolates_D, inputs=interpolates,
    grad_outputs=ones) is realized via jax.vjp on the discriminator function.
    """
    # TODO(synk): torch.autograd.grad (graph differentiation) has no direct
    # Pallas equivalent; it is done with jax.vjp (glue). Only the norm/penalty
    # reduction runs in the Pallas kernel.
    interpolates_D, vjp_fn = jax.vjp(discriminator_fn, interpolates)
    grad_outputs = jnp.ones_like(interpolates_D)      # get_grad_outputs(...)
    (grad_interp,) = vjp_fn(grad_outputs)
    return gradient_penalty_from_grad(grad_interp)


if __name__ == "__main__":
    key = jax.random.PRNGKey(0)
    k_x, k_w = jax.random.split(key)

    # NCHW interpolates, small shapes (N = C*H*W = 1024 -> S = 8 lanes of 128).
    B, C, H, W = 2, 4, 16, 16
    interpolates = jax.random.normal(k_x, (B, C, H, W), dtype=jnp.float32)

    # Deterministic synthetic "discriminator": per-sample scalar score.
    w = jax.random.normal(k_w, (C, H, W), dtype=jnp.float32) * 0.05

    def discriminator_fn(x):
        # (B, C, H, W) -> (B, 1)
        return jnp.tanh(jnp.einsum("bchw,chw->b", x, w))[:, None]

    loss = gradient_penalty_loss(discriminator_fn, interpolates)
    loss = jax.block_until_ready(loss)

    # Reference in plain JAX for sanity.
    y, vjp_fn = jax.vjp(discriminator_fn, interpolates)
    (g_ref,) = vjp_fn(jnp.ones_like(y))
    g_ref = g_ref.reshape(B, -1)
    ref = jnp.mean((jnp.linalg.norm(g_ref, axis=1) - 1.0) ** 2)

    assert jnp.allclose(loss, ref, rtol=1e-5, atol=1e-6), (loss, ref)
    print("KERNEL_OK")
</pallas_src>

<mosaic_0001>
module attributes {stable_mosaic.version = 11 : i64} {
  func.func @_gp_kernel(%arg0: i32, %arg1: i32, %arg2: memref<1x8x128xf32, #tpu.memory_space<vmem>>, %arg3: memref<1x1x128xf32, #tpu.memory_space<vmem>>, %arg4: memref<1x128xf32, #tpu.memory_space<vmem>>) attributes {dimension_semantics = [#tpu.dimension_semantics<parallel>, #tpu.dimension_semantics<arbitrary>], iteration_bounds = array<i64: 2, 1>, scalar_prefetch = 0 : i64, scratch_operands = 1 : i64, tpu.core_type = #tpu.core_type<tc>, window_params = [{transform_indices = @transform_0, window_bounds = array<i64: 1, 8, 128>}, {transform_indices = @transform_1, window_bounds = array<i64: 1, 1, 128>}]} {
    %c0_i32 = arith.constant 0 : i32
    %0 = arith.cmpi eq, %arg1, %c0_i32 : i32
    %1 = arith.extui %0 : i1 to i32
    %c0_i32_0 = arith.constant 0 : i32
    %2 = arith.cmpi ne, %1, %c0_i32_0 : i32
    scf.if %2 {
      %cst_9 = arith.constant 0.000000e+00 : f32
      %14 = vector.broadcast %cst_9 : f32 to vector<1x128xf32>
      %c0_10 = arith.constant 0 : index
      %c0_11 = arith.constant 0 : index
      %15 = vector.load %arg4[%c0_10, %c0_11] : memref<1x128xf32, #tpu.memory_space<vmem>>, vector<1x128xf32>
      tpu.vector_store %arg4[%c0_10, %c0_11], %14 {strides = array<i32>} : memref<1x128xf32, #tpu.memory_space<vmem>>, vector<1x128xf32>,
    } else {
    }
    %c0 = arith.constant 0 : index
    %c0_1 = arith.constant 0 : index
    %c0_2 = arith.constant 0 : index
    %3 = vector.load %arg2[%c0, %c0_1, %c0_2] : memref<1x8x128xf32, #tpu.memory_space<vmem>>, vector<1x8x128xf32>
    %4 = vector.shape_cast %3 : vector<1x8x128xf32> to vector<8x128xf32>
    %5 = arith.mulf %4, %4 : vector<8x128xf32>
    %c0_3 = arith.constant 0 : index
    %c0_4 = arith.constant 0 : index
    %6 = vector.load %arg4[%c0_3, %c0_4] : memref<1x128xf32, #tpu.memory_space<vmem>>, vector<1x128xf32>
    %cst = arith.constant dense<0.000000e+00> : vector<128xf32>
    %7 = vector.multi_reduction <add>, %5, %cst [0] : vector<8x128xf32> to vector<128xf32>
    %8 = vector.shape_cast %7 : vector<128xf32> to vector<1x128xf32>
    %9 = arith.addf %6, %8 : vector<1x128xf32>
    %c0_5 = arith.constant 0 : index
    %c0_6 = arith.constant 0 : index
    %10 = vector.load %arg4[%c0_5, %c0_6] : memref<1x128xf32, #tpu.memory_space<vmem>>, vector<1x128xf32>
    tpu.vector_store %arg4[%c0_5, %c0_6], %9 {strides = array<i32>} : memref<1x128xf32, #tpu.memory_space<vmem>>, vector<1x128xf32>,
    %c0_i32_7 = arith.constant 0 : i32
    %11 = arith.cmpi eq, %arg1, %c0_i32_7 : i32
    %12 = arith.extui %11 : i1 to i32
    %c0_i32_8 = arith.constant 0 : i32
    %13 = arith.cmpi ne, %12, %c0_i32_8 : i32
    scf.if %13 {
      %c0_9 = arith.constant 0 : index
      %c0_10 = arith.constant 0 : index
      %14 = vector.load %arg4[%c0_9, %c0_10] : memref<1x128xf32, #tpu.memory_space<vmem>>, vector<1x128xf32>
      %15 = vector.shape_cast %14 : vector<1x128xf32> to vector<1x1x128xf32>
      %cst_11 = arith.constant dense<0.000000e+00> : vector<1xf32>
      %16 = vector.multi_reduction <add>, %15, %cst_11 [1, 2] : vector<1x1x128xf32> to vector<1xf32>
      %17 = vector.shape_cast %16 : vector<1xf32> to vector<1x1x1xf32>
      %18 = vector.extract %17[0, 0, 0] : f32 from vector<1x1x1xf32>
      %19 = math.sqrt %18 : f32
      %cst_12 = arith.constant 1.000000e+00 : f32
      %20 = arith.subf %19, %cst_12 : f32
      %21 = arith.mulf %20, %20 : f32
      %22 = vector.broadcast %21 : f32 to vector<1x1x128xf32>
      %c0_13 = arith.constant 0 : index
      %c0_14 = arith.constant 0 : index
      %c0_15 = arith.constant 0 : index
      %23 = vector.load %arg3[%c0_13, %c0_14, %c0_15] : memref<1x1x128xf32, #tpu.memory_space<vmem>>, vector<1x1x128xf32>
      tpu.vector_store %arg3[%c0_13, %c0_14, %c0_15], %22 {strides = array<i32>} : memref<1x1x128xf32, #tpu.memory_space<vmem>>, vector<1x1x128xf32>,
    } else {
    }
    return
  }
  func.func @transform_0(%arg0: i32, %arg1: i32) -> (i32, i32, i32) {
    %c0_i32 = arith.constant 0 : i32
    %c0_i32_0 = arith.constant 0 : i32
    return %arg0, %arg1, %c0_i32 : i32, i32, i32
  }
  func.func @transform_1(%arg0: i32, %arg1: i32) -> (i32, i32, i32) {
    %c0_i32 = arith.constant 0 : i32
    %c0_i32_0 = arith.constant 0 : i32
    %c0_i32_1 = arith.constant 0 : i32
    return %arg0, %c0_i32, %c0_i32_0 : i32, i32, i32
  }
}

</mosaic_0001>

<llo_original>
// kernel: gradient_penalty_from_grad.1
$region0: #{gradient_penalty_from_grad.1}
  #allocation0 [shape = 'u32[]', space=smem, size = 0x4, offset = 0x4, fixed_abs, tag = 'smem constant byte address 0x4 - core index']
  #allocation1 [shape = 'u32[144,128]{1,0:T(1,128)}', space=vmem, size = 0x12000, scoped, tag = 'internal scratch']
  #allocation2 [shape = 'f32[1,128]{1,0:T(1,128)}', space=vmem, size = 0x200, scoped, tag = 'scratch operand']
  %s0 = inlined_call_operand.vmem [shape: f32[2,8,128], index: 0, kind: input, shape index: {}]
  %s1 = inlined_call_operand.vmem [shape: f32[2,1,128], index: 1, kind: output, shape index: {}]
  %s2 = sld [smem:[#allocation0]]
  $region45: #{gradient_penalty_from_grad.1} parent=0
    _
  %s4 = ssub.s32 1, %s2
  %s5 = scalar_select 0, %s4, %s2
  loop: start=0, step=1, limit=4
  $region2: #{gradient_penalty_from_grad.1} parent=0 // loop_pre_header
    _
  $region3: #{gradient_penalty_from_grad.1} parent=0 // loop_header
    %s7 = sphi 0, %s11
    %p8 = scmp.ge.s32.totalorder %s7, 4
    %s14 = sphi 0, %s26
    %s15 = sphi 0, %s22
    %s16 = sphi 0, %s14
    %s17 = sphi 0, %s15
    %s18 = sphi 0, %s16
    %s19 = sphi 0, %s17
    %s31 = sphi 0, %s33
    %s34 = sphi 0, %s31
    %s35 = sphi 0, %s34
    %s51 = sphi 0, %s35
    %s57 = sphi 0, %s59
    %s60 = sphi 0, %s57
    %s61 = sphi 0, %s60
    %s77 = sphi 0, %s61
  $region4: #{gradient_penalty_from_grad.1} parent=0 // loop_header_branch
    %10 = sbr.rel (%p8) target = $region8
  $region5: #{gradient_penalty_from_grad.1} parent=0 // loop_body
    %s12 = ssub.s32 %s7, 1
    %s13 = ssub.s32 %s7, 2
    %s20 = sadd.s32 1, %s15
    %p21 = scmp.ge.s32.totalorder %s20, 1
    %s22 = scalar_select %p21, 0, %s20
    %s23 = sadd.s32 1, %s14
    %s24 = scalar_select %p21, %s23, %s14
    %p25 = scmp.ge.s32.totalorder %s24, 2
    %s26 = scalar_select %p25, 0, %s24
    %s27 = ssub.s32 %s14, %s26
    %s28 = ssub.s32 %s15, %s22
    %s29 = sor.u32 %s27, %s28
    %p30 = scmp.eq.s32.totalorder %s29, 0
    %s32 = sadd.s32 %s31, 1
    %s33 = scalar_select %p30, %s31, %s32
    %p36 = pneg %p30
    %p37 = scmp.eq.s32.totalorder %s7, 1
    %p38 = por %p36, %p37
    %p39 = scmp.ne.s32.totalorder %s31, %s34
    %p40 = scmp.eq.s32.totalorder %s7, 0
    %p41 = por %p39, %p40
    %p42 = scmp.ne.s32.totalorder %s31, %s34
    %p43 = scmp.eq.s32.totalorder %s12, 1
    %p44 = por %p42, %p43
    %p45 = scmp.ne.s32.totalorder %s34, %s35
    %p46 = scmp.eq.s32.totalorder %s12, 0
    %p47 = por %p45, %p46
    %p48 = scmp.ne.s32.totalorder %s34, %s35
    %p49 = scmp.eq.s32.totalorder %s13, 1
    %p50 = por %p48, %p49
    %p52 = scmp.ne.s32.totalorder %s35, %s51
    %p53 = scmp.eq.s32.totalorder %s13, 0
    %p54 = por %p52, %p53
    %s55 = ssub.s32 %s14, %s26
    %p56 = scmp.eq.s32.totalorder %s55, 0
    %s58 = sadd.s32 %s57, 1
    %s59 = scalar_select %p56, %s57, %s58
    %p62 = pneg %p56
    %p63 = scmp.eq.s32.totalorder %s7, 1
    %p64 = por %p62, %p63
    %p65 = scmp.ne.s32.totalorder %s57, %s60
    %p66 = scmp.eq.s32.totalorder %s7, 0
    %p67 = por %p65, %p66
    %p68 = scmp.ne.s32.totalorder %s57, %s60
    %p69 = scmp.eq.s32.totalorder %s12, 1
    %p70 = por %p68, %p69
    %p71 = scmp.ne.s32.totalorder %s60, %s61
    %p72 = scmp.eq.s32.totalorder %s12, 0
    %p73 = por %p71, %p72
    %p74 = scmp.ne.s32.totalorder %s60, %s61
    %p75 = scmp.eq.s32.totalorder %s13, 1
    %p76 = por %p74, %p75
    %p78 = scmp.ne.s32.totalorder %s61, %s77
    %p79 = scmp.eq.s32.totalorder %s13, 0
    %p80 = por %p78, %p79
    %p81 = scmp.le.s32.totalorder 1, %s7
    %p82 = scmp.lt.s32.totalorder %s7, 3
    %p83 = pnand %p81, %p82
    %p84 = pneg %p83
    // Predicated region
    $region9: #{gradient_penalty_from_grad.1} parent=5 // pred_check
      _
    $region10: #{gradient_penalty_from_grad.1} parent=5 // pred_check_branch
      %86 = sbr.rel (%p83) target = $region12
    $region11: #{gradient_penalty_from_grad.1} parent=5 // pred_region
      %s87 = ssub.s32 %s7, 1
    $region12: #{gradient_penalty_from_grad.1} parent=5 // pred_fallthru
      _
    %p88 = scmp.lt.s32.totalorder %s7, 2
    // Predicated region
    $region13: #{gradient_penalty_from_grad.1} parent=5 // pred_check
      %p89 = pneg %p88
    $region14: #{gradient_penalty_from_grad.1} parent=5 // pred_check_branch
      %91 = sbr.rel (%p89) target = $region16
    $region15: #{gradient_penalty_from_grad.1} parent=5 // pred_region
      // Predicated region
      $region17: #{gradient_penalty_from_grad.1} parent=15 // pred_check
        %p92 = pneg %p41
      $region18: #{gradient_penalty_from_grad.1} parent=15 // pred_check_branch
        %94 = sbr.rel (%p92) target = $region20
      $region19: #{gradient_penalty_from_grad.1} parent=15 // pred_region
        %p95 = scmp.lt.s32.totalorder %s14, 1
        %s96 = scalar_select %p95, %s14, 1
        %p97 = scmp.lt.s32.totalorder %s15, 0
        %s98 = scalar_select %p97, %s15, 0
        %s99 = sadd.s32 %s98, %s96
        %s100 = smul.addr %s99, 8
        %s101 = scalar_lea.vmem %s0, %s100
      $region20: #{gradient_penalty_from_grad.1} parent=15 // pred_fallthru
        _
    $region16: #{gradient_penalty_from_grad.1} parent=5 // pred_fallthru
      _
    %p102 = scmp.le.s32.totalorder 1, %s7
    %p103 = scmp.lt.s32.totalorder %s7, 3
    %p104 = pnand %p102, %p103
    %p105 = pneg %p104
    // Predicated region
    $region21: #{gradient_penalty_from_grad.1} parent=5 // pred_check
      _
    $region22: #{gradient_penalty_from_grad.1} parent=5 // pred_check_branch
      %107 = sbr.rel (%p104) target = $region24
    $region23: #{gradient_penalty_from_grad.1} parent=5 // pred_region
      %s108 = ssub.s32 %s7, 1
      %p109 = scmp.lt.s32.totalorder %s16, 1
      %s110 = scalar_select %p109, %s16, 1
      %p111 = scmp.lt.s32.totalorder %s17, 0
      %s112 = scalar_select %p111, %s17, 0
      %s113 = sadd.s32 %s112, %s110
      %s114 = smul.addr %s113, 8
      %s115 = scalar_lea.vmem %s0, %s114
      %p116 = pneg %p47
      %p117 = pneg %p44
      %p118 = pneg %p73
      %p119 = pneg %p70
      %p120 = scmp.lt.s32.totalorder %s16, 1
      %s121 = scalar_select %p120, %s16, 1
      %s122 = scalar_lea.vmem %s1, %s121
      %p123 = scmp.lt.s32.totalorder %s16, 1
      %s124 = scalar_select %p123, %s16, 1
      %p125 = scmp.lt.s32.totalorder %s17, 0
      %s126 = scalar_select %p125, %s17, 0
      %s127 = sadd.s32 %s126, %s124
      %s128 = smul.addr %s127, 8
      %s129 = scalar_lea.vmem %s0, %s128
      %p130 = scmp.lt.s32.totalorder %s16, 1
      %s131 = scalar_select %p130, %s16, 1
      %s132 = scalar_lea.vmem %s1, %s131
      %p133 = scmp.eq.s32.totalorder %s17, 0
      // Predicated region
      $region25: #{gradient_penalty_from_grad.1} parent=23 // pred_check
        %p134 = pneg %p133
      $region26: #{gradient_penalty_from_grad.1} parent=23 // pred_check_branch
        %136 = sbr.rel (%p134) target = $region28
      $region27: #{gradient_penalty_from_grad.1} parent=23 // pred_region
        %137 = vst [vmem:[#allocation2] sm:$0x1] 0.0
      $region28: #{gradient_penalty_from_grad.1} parent=23 // pred_fallthru
        _
      %v138 = vld [vmem:[%s129] sm:$0xff]
      %v139 = vmul.f32 %v138, %v138
      %v140 = vld [vmem:[#allocation2] sm:$0x1]
      %v141 = vrot.slane %v139, 4
      %v142 = vadd.f32 %v139, %v141
      %v143 = vrot.slane %v142, 2
      %v144 = vadd.f32 %v142, %v143
      %v145 = vrot.slane %v144, 1
      %v146 = vadd.f32 %v144, %v145
      %v147 = vadd.f32 %v140, %v146
      %148 = vst [vmem:[#allocation2] sm:$0x1] %v147
      // Predicated region
      $region29: #{gradient_penalty_from_grad.1} parent=23 // pred_check
        %p149 = pneg %p133
      $region30: #{gradient_penalty_from_grad.1} parent=23 // pred_check_branch
        %151 = sbr.rel (%p149) target = $region32
      $region31: #{gradient_penalty_from_grad.1} parent=23 // pred_region
        %v152 = vld [vmem:[#allocation2] sm:$0x1]
        %vm153 = vcmask 1040384
        %v154 = vsel %vm153, %v152, 0.0
        %155 = vadd.xlane.f32.xlu0 %v154
        %v156 = vpop.xlane.xlu0 %155
        %v157 = vrot.slane %v156, 4
        %v158 = vadd.f32 %v156, %v157
        %v159 = vrot.slane %v158, 2
        %v160 = vadd.f32 %v158, %v159
        %v161 = vrot.slane %v160, 1
        %v162 = vadd.f32 %v160, %v161
        %s163 = vtos %v162
        %v164 = vstv %s163
        %v165 = vrsqrt.pop %v164
        %v166 = vmul.f32 %v164, %v165
        %vm167 = vcmp.eq.f32.partialorder %v164, inf
        %v168 = vsel %vm167, %v164, %v166
        %vm169 = vcmp.eq.f32.partialorder %v164, 0.0
        %v170 = vand.u32 %v164, 2147483648
        %v171 = vsel %vm169, %v170, %v168
        %s172 = vtos %v171
        %s173 = ssub.f32 %s172, 1.0
        %s174 = smul.f32 %s173, %s173
        %v175 = vstv %s174
        %176 = vst [vmem:[%s132] sm:$0x1] %v175
      $region32: #{gradient_penalty_from_grad.1} parent=23 // pred_fallthru
        _
      %p177 = scmp.lt.s32.totalorder %s16, 1
      %s178 = scalar_select %p177, %s16, 1
      %s179 = scalar_lea.vmem %s1, %s178
      // Predicated region
      $region33: #{gradient_penalty_from_grad.1} parent=23 // pred_check
        %p180 = pneg %p70
      $region34: #{gradient_penalty_from_grad.1} parent=23 // pred_check_branch
        %182 = sbr.rel (%p180) target = $region36
      $region35: #{gradient_penalty_from_grad.1} parent=23 // pred_region
        _
      $region36: #{gradient_penalty_from_grad.1} parent=23 // pred_fallthru
        _
    $region24: #{gradient_penalty_from_grad.1} parent=5 // pred_fallthru
      _
    %p183 = scmp.le.s32.totalorder 2, %s7
    // Predicated region
    $region37: #{gradient_penalty_from_grad.1} parent=5 // pred_check
      %p184 = pneg %p183
    $region38: #{gradient_penalty_from_grad.1} parent=5 // pred_check_branch
      %186 = sbr.rel (%p184) target = $region40
    $region39: #{gradient_penalty_from_grad.1} parent=5 // pred_region
      %s187 = ssub.s32 %s7, 2
      // Predicated region
      $region41: #{gradient_penalty_from_grad.1} parent=39 // pred_check
        %p188 = pneg %p76
      $region42: #{gradient_penalty_from_grad.1} parent=39 // pred_check_branch
        %190 = sbr.rel (%p188) target = $region44
      $region43: #{gradient_penalty_from_grad.1} parent=39 // pred_region
        %p191 = scmp.lt.s32.totalorder %s18, 1
        %s192 = scalar_select %p191, %s18, 1
        %s193 = scalar_lea.vmem %s1, %s192
      $region44: #{gradient_penalty_from_grad.1} parent=39 // pred_fallthru
        _
    $region40: #{gradient_penalty_from_grad.1} parent=5 // pred_fallthru
      _
  $region6: #{gradient_penalty_from_grad.1} parent=0 // loop_footer
    %s11 = sadd.s32 1, %s7
  $region7: #{gradient_penalty_from_grad.1} parent=0 // loop_footer_branch
    %6 = sbr.rel target = $region3
  $region8: #{gradient_penalty_from_grad.1} parent=0 // loop_exit
    _

</llo_original>
